<compile_context>
chip_gen: v6e
topology: v6e:2x2x1
jax: 0.10.0
libtpu: 0.0.40
codegen_flags: <defaults>
</compile_context>

<pallas_src>
import jax
import jax.numpy as jnp
from jax.experimental import pallas as pl
from jax.experimental.pallas import tpu as pltpu


def _elbo_kernel(x_ref, t_ref, mu_ref, lv_ref, out_ref, acc_ref, kl_ref):
    step = pl.program_id(0)

    @pl.when(step == 0)
    def _init():
        acc_ref[...] = jnp.zeros_like(acc_ref)
        # KL term: -0.5 * sum(1 + log_var - mu^2 - exp(log_var)) -- computed once.
        mu = mu_ref[...].astype(jnp.float32)
        lv = lv_ref[...].astype(jnp.float32)
        kl_ref[0] = -0.5 * jnp.sum(1.0 + lv - mu * mu - jnp.exp(lv))

    # Reconstruction partial: elementwise accumulate (pure VALU, no per-step
    # cross-lane reduce). Upcast in-kernel so bf16 inputs stay bf16 over DMA.
    diff = x_ref[...].astype(jnp.float32) - t_ref[...].astype(jnp.float32)
    acc_ref[...] += diff * diff

    @pl.when(step == pl.num_programs(0) - 1)
    def _finalize():
        out_ref[0, 0] = kl_ref[0] + jnp.sum(acc_ref[...])


def elbo(input_nchw, target_nchw, mu, log_var, *, tile_rows=2048):
    """Computes kl + sum-MSE reconstruction as a scalar float32."""
    n_elem = input_nchw.size

    # Flatten to lane-dense (rows, 128); zero-pad so rows is a multiple of the
    # tile height (padding both x and t with zeros does not change the loss).
    rows = pl.cdiv(n_elem, 128)
    rows8 = ((rows + 7) // 8) * 8                      # sublane-align
    tr = max(8, (min(tile_rows, rows8) // 8) * 8)      # tile height, multiple of 8
    rows_padded = pl.cdiv(rows8, tr) * tr
    pad = rows_padded * 128 - n_elem

    x_flat = input_nchw.reshape(-1)
    t_flat = target_nchw.reshape(-1)
    if pad:
        x_flat = jnp.pad(x_flat, (0, pad))
        t_flat = jnp.pad(t_flat, (0, pad))
    x2d = x_flat.reshape(rows_padded, 128)
    t2d = t_flat.reshape(rows_padded, 128)

    mu2d = mu.reshape(mu.shape[0], -1)
    lv2d = log_var.reshape(log_var.shape[0], -1)

    grid = (rows_padded // tr,)
    elem_bytes = x2d.dtype.itemsize

    cost = pl.CostEstimate(
        flops=3 * rows_padded * 128 + 5 * mu2d.size,
        transcendentals=mu2d.size,
        bytes_accessed=(x2d.size + t2d.size) * elem_bytes
        + (mu2d.size + lv2d.size) * mu2d.dtype.itemsize
        + 4,
    )

    out = pl.pallas_call(
        _elbo_kernel,
        out_shape=jax.ShapeDtypeStruct((1, 1), jnp.float32),
        grid=grid,
        in_specs=[
            pl.BlockSpec((tr, 128), lambda i: (i, 0)),
            pl.BlockSpec((tr, 128), lambda i: (i, 0)),
            # mu / log_var: full-array blocks, constant index -> fetched once.
            pl.BlockSpec(mu2d.shape, lambda i: (0, 0)),
            pl.BlockSpec(lv2d.shape, lambda i: (0, 0)),
        ],
        out_specs=pl.BlockSpec(memory_space=pltpu.MemorySpace.SMEM),
        scratch_shapes=[
            pltpu.VMEM((tr, 128), jnp.float32),   # recon accumulator
            pltpu.SMEM((1,), jnp.float32),        # kl value (computed at step 0)
        ],
        compiler_params=pltpu.CompilerParams(
            dimension_semantics=("arbitrary",),   # reduction axis
        ),
        cost_estimate=cost,
    )(x2d, t2d, mu2d, lv2d)
    return out[0, 0]


def _elbo_ref(input_nchw, target_nchw, mu, log_var):
    recon = jnp.sum((input_nchw - target_nchw) ** 2)
    kl = -0.5 * jnp.sum(1.0 + log_var - mu**2 - jnp.exp(log_var))
    return kl + recon


if __name__ == "__main__":
    key = jax.random.PRNGKey(0)
    k1, k2, k3, k4 = jax.random.split(key, 4)

    # Small, forward-consistent shapes: batch=2, channels=4, spatial=16, latent=32.
    x = jax.random.normal(k1, (2, 4, 16, 16), dtype=jnp.float32)
    t = jax.random.normal(k2, (2, 4, 16, 16), dtype=jnp.float32)
    mu = jax.random.normal(k3, (2, 32), dtype=jnp.float32)
    log_var = jax.random.normal(k4, (2, 32), dtype=jnp.float32) * 0.1

    ref = jax.block_until_ready(_elbo_ref(x, t, mu, log_var))

    # Single-tile path.
    out = jax.block_until_ready(elbo(x, t, mu, log_var))
    assert jnp.allclose(out, ref, rtol=1e-5, atol=1e-5), (out, ref)

    # Multi-step grid path (force a small tile -> grid of 2, exercises the
    # accumulate-across-steps / init / finalize logic).
    out2 = jax.block_until_ready(elbo(x, t, mu, log_var, tile_rows=8))
    assert jnp.allclose(out2, ref, rtol=1e-5, atol=1e-5), (out2, ref)

    # Padding path (element count not a multiple of 128).
    k5, k6, k7, k8 = jax.random.split(jax.random.PRNGKey(1), 4)
    x3 = jax.random.normal(k5, (2, 3, 10, 10), dtype=jnp.float32)
    t3 = jax.random.normal(k6, (2, 3, 10, 10), dtype=jnp.float32)
    mu3 = jax.random.normal(k7, (2, 8), dtype=jnp.float32)
    lv3 = jax.random.normal(k8, (2, 8), dtype=jnp.float32) * 0.1
    ref3 = jax.block_until_ready(_elbo_ref(x3, t3, mu3, lv3))
    out3 = jax.block_until_ready(elbo(x3, t3, mu3, lv3))
    assert jnp.allclose(out3, ref3, rtol=1e-5, atol=1e-5), (out3, ref3)

    print("KERNEL_OK")
</pallas_src>

<mosaic_0001>
module attributes {stable_mosaic.version = 11 : i64} {
  func.func @_elbo_kernel(%arg0: i32, %arg1: memref<16x128xf32, #tpu.memory_space<vmem>>, %arg2: memref<16x128xf32, #tpu.memory_space<vmem>>, %arg3: memref<2x32xf32, #tpu.memory_space<vmem>>, %arg4: memref<2x32xf32, #tpu.memory_space<vmem>>, %arg5: memref<1x1xf32, #tpu.memory_space<smem>>, %arg6: memref<16x128xf32, #tpu.memory_space<vmem>>, %arg7: memref<1xf32, #tpu.memory_space<smem>>) attributes {dimension_semantics = [#tpu.dimension_semantics<arbitrary>], iteration_bounds = array<i64: 1>, scalar_prefetch = 0 : i64, scratch_operands = 2 : i64, tpu.core_type = #tpu.core_type<tc>, window_params = [{transform_indices = @transform_0, window_bounds = array<i64: 16, 128>}, {transform_indices = @transform_1, window_bounds = array<i64: 16, 128>}, {pipeline_mode = #tpu.pipeline_mode<synchronous>, transform_indices = @transform_2, window_bounds = array<i64: 2, 32>}, {pipeline_mode = #tpu.pipeline_mode<synchronous>, transform_indices = @transform_3, window_bounds = array<i64: 2, 32>}, {transform_indices = @transform_4, window_bounds = array<i64: 1, 1>}]} {
    %c0_i32 = arith.constant 0 : i32
    %0 = arith.cmpi eq, %arg0, %c0_i32 : i32
    %1 = arith.extui %0 : i1 to i32
    %c0_i32_0 = arith.constant 0 : i32
    %2 = arith.cmpi ne, %1, %c0_i32_0 : i32
    scf.if %2 {
      %cst = arith.constant 0.000000e+00 : f32
      %13 = vector.broadcast %cst : f32 to vector<16x128xf32>
      %c0_10 = arith.constant 0 : index
      %c0_11 = arith.constant 0 : index
      %14 = vector.load %arg6[%c0_10, %c0_11] : memref<16x128xf32, #tpu.memory_space<vmem>>, vector<16x128xf32>
      tpu.vector_store %arg6[%c0_10, %c0_11], %13 {strides = array<i32>} : memref<16x128xf32, #tpu.memory_space<vmem>>, vector<16x128xf32>,
      %c0_12 = arith.constant 0 : index
      %c0_13 = arith.constant 0 : index
      %15 = vector.load %arg3[%c0_12, %c0_13] : memref<2x32xf32, #tpu.memory_space<vmem>>, vector<2x32xf32>
      %c0_14 = arith.constant 0 : index
      %c0_15 = arith.constant 0 : index
      %16 = vector.load %arg4[%c0_14, %c0_15] : memref<2x32xf32, #tpu.memory_space<vmem>>, vector<2x32xf32>
      %cst_16 = arith.constant 1.000000e+00 : f32
      %17 = vector.broadcast %cst_16 : f32 to vector<2x32xf32>
      %18 = arith.addf %17, %16 : vector<2x32xf32>
      %19 = arith.mulf %15, %15 : vector<2x32xf32>
      %20 = arith.subf %18, %19 : vector<2x32xf32>
      %21 = math.exp %16 : vector<2x32xf32>
      %22 = arith.subf %20, %21 : vector<2x32xf32>
      %23 = vector.shape_cast %22 : vector<2x32xf32> to vector<1x2x32xf32>
      %cst_17 = arith.constant dense<0.000000e+00> : vector<1xf32>
      %24 = vector.multi_reduction <add>, %23, %cst_17 [1, 2] : vector<1x2x32xf32> to vector<1xf32>
      %25 = vector.shape_cast %24 : vector<1xf32> to vector<1x1x1xf32>
      %26 = vector.extract %25[0, 0, 0] : f32 from vector<1x1x1xf32>
      %cst_18 = arith.constant -5.000000e-01 : f32
      %27 = arith.mulf %cst_18, %26 : f32
      %c0_19 = arith.constant 0 : index
      %28 = memref.load %arg7[%c0_19] : memref<1xf32, #tpu.memory_space<smem>>
      memref.store %27, %arg7[%c0_19] : memref<1xf32, #tpu.memory_space<smem>>
    } else {
    }
    %c0 = arith.constant 0 : index
    %c0_1 = arith.constant 0 : index
    %3 = vector.load %arg1[%c0, %c0_1] : memref<16x128xf32, #tpu.memory_space<vmem>>, vector<16x128xf32>
    %c0_2 = arith.constant 0 : index
    %c0_3 = arith.constant 0 : index
    %4 = vector.load %arg2[%c0_2, %c0_3] : memref<16x128xf32, #tpu.memory_space<vmem>>, vector<16x128xf32>
    %5 = arith.subf %3, %4 : vector<16x128xf32>
    %c0_4 = arith.constant 0 : index
    %c0_5 = arith.constant 0 : index
    %6 = vector.load %arg6[%c0_4, %c0_5] : memref<16x128xf32, #tpu.memory_space<vmem>>, vector<16x128xf32>
    %7 = arith.mulf %5, %5 : vector<16x128xf32>
    %8 = arith.addf %6, %7 : vector<16x128xf32>
    %c0_6 = arith.constant 0 : index
    %c0_7 = arith.constant 0 : index
    %9 = vector.load %arg6[%c0_6, %c0_7] : memref<16x128xf32, #tpu.memory_space<vmem>>, vector<16x128xf32>
    tpu.vector_store %arg6[%c0_6, %c0_7], %8 {strides = array<i32>} : memref<16x128xf32, #tpu.memory_space<vmem>>, vector<16x128xf32>,
    %c0_i32_8 = arith.constant 0 : i32
    %10 = arith.cmpi eq, %arg0, %c0_i32_8 : i32
    %11 = arith.extui %10 : i1 to i32
    %c0_i32_9 = arith.constant 0 : i32
    %12 = arith.cmpi ne, %11, %c0_i32_9 : i32
    scf.if %12 {
      %c0_10 = arith.constant 0 : index
      %13 = memref.load %arg7[%c0_10] : memref<1xf32, #tpu.memory_space<smem>>
      %c0_11 = arith.constant 0 : index
      %c0_12 = arith.constant 0 : index
      %14 = vector.load %arg6[%c0_11, %c0_12] : memref<16x128xf32, #tpu.memory_space<vmem>>, vector<16x128xf32>
      %15 = vector.shape_cast %14 : vector<16x128xf32> to vector<1x16x128xf32>
      %cst = arith.constant dense<0.000000e+00> : vector<1xf32>
      %16 = vector.multi_reduction <add>, %15, %cst [1, 2] : vector<1x16x128xf32> to vector<1xf32>
      %17 = vector.shape_cast %16 : vector<1xf32> to vector<1x1x1xf32>
      %18 = vector.extract %17[0, 0, 0] : f32 from vector<1x1x1xf32>
      %19 = arith.addf %13, %18 : f32
      %c0_13 = arith.constant 0 : index
      %c0_14 = arith.constant 0 : index
      %20 = memref.load %arg5[%c0_13, %c0_14] : memref<1x1xf32, #tpu.memory_space<smem>>
      memref.store %19, %arg5[%c0_13, %c0_14] : memref<1x1xf32, #tpu.memory_space<smem>>
    } else {
    }
    return
  }
  func.func @transform_0(%arg0: i32) -> (i32, i32) {
    %c0_i32 = arith.constant 0 : i32
    %c0_i32_0 = arith.constant 0 : i32
    return %arg0, %c0_i32 : i32, i32
  }
  func.func @transform_1(%arg0: i32) -> (i32, i32) {
    %c0_i32 = arith.constant 0 : i32
    %c0_i32_0 = arith.constant 0 : i32
    return %arg0, %c0_i32 : i32, i32
  }
  func.func @transform_2(%arg0: i32) -> (i32, i32) {
    %c0_i32 = arith.constant 0 : i32
    %c0_i32_0 = arith.constant 0 : i32
    %c0_i32_1 = arith.constant 0 : i32
    return %c0_i32, %c0_i32_0 : i32, i32
  }
  func.func @transform_3(%arg0: i32) -> (i32, i32) {
    %c0_i32 = arith.constant 0 : i32
    %c0_i32_0 = arith.constant 0 : i32
    %c0_i32_1 = arith.constant 0 : i32
    return %c0_i32, %c0_i32_0 : i32, i32
  }
  func.func @transform_4(%arg0: i32) -> (i32, i32) {
    %c0_i32 = arith.constant 0 : i32
    %c0_i32_0 = arith.constant 0 : i32
    %c0_i32_1 = arith.constant 0 : i32
    return %c0_i32, %c0_i32_0 : i32, i32
  }
}

</mosaic_0001>

<llo_original>
// kernel: tpu_custom_call.1
$region0: #{tpu_custom_call.1}
  #allocation0 [shape = 'u32[]', space=smem, size = 0x4, offset = 0x4, fixed_abs, tag = 'smem constant byte address 0x4 - core index']
  #allocation1 [shape = 'u32[144,128]{1,0:T(1,128)}', space=vmem, size = 0x12000, scoped, tag = 'internal scratch']
  #allocation2 [shape = 'f32[16,128]{1,0:T(8,128)}', space=vmem, size = 0x2000, scoped, tag = 'scratch operand']
  #allocation3 [shape = 'f32[1]{0:T(128)}', space=smem, size = 0x200, scoped, tag = 'scratch operand']
  %s0 = inlined_call_operand.hbm [shape: f32[16,128], index: 0, kind: input, shape index: {}]
  %s1 = inlined_call_operand.hbm [shape: f32[16,128], index: 1, kind: input, shape index: {}]
  %s2 = inlined_call_operand.vmem [shape: f32[2,32], index: 2, kind: input, shape index: {}]
  %s3 = inlined_call_operand.vmem [shape: f32[2,32], index: 3, kind: input, shape index: {}]
  %s4 = inlined_call_operand.hbm [shape: f32[1,1], index: 4, kind: output, shape index: {}]
  %s5 = sld [smem:[#allocation0]]
  $region42: #{tpu_custom_call.1} parent=0
    _
  %s7 = ssub.s32 1, %s5
  %s8 = scalar_select 0, %s7, %s5
  $region1: #{tpu_custom_call.1} parent=0
    #allocation4 [shape = 'u8[8192]{0}', space=vmem, size = 0x2000, scoped, tag = 'input window, operand 0, single buffered']
    #allocation5 [shape = 's32[1]{0}', space=sflag, size = 0x4, scoped, tag = 'scoped memory for tpu_custom_call.1']
    #allocation6 [shape = 's32[1]{0}', space=sflag, size = 0x4, scoped, tag = 'scoped memory for tpu_custom_call.1']
    #allocation7 [shape = 'u8[8192]{0}', space=vmem, size = 0x2000, scoped, tag = 'input window, operand 1, single buffered']
    #allocation8 [shape = 's32[1]{0}', space=sflag, size = 0x4, scoped, tag = 'scoped memory for tpu_custom_call.1']
    #allocation9 [shape = 'u8[512]{0}', space=smem, size = 0x200, scoped, tag = 'output window, operand 0, single buffered']
    %9 = vsyncpa [#allocation5], 0
    %10 = vsyncpa [#allocation8], 0
    %11 = vsyncpa [#allocation6], 0
    // Predicated region
    $region2: #{tpu_custom_call.1} parent=1 // pred_check
      _
    $region3: #{tpu_custom_call.1} parent=1 // pred_check_branch
      %13 = sbr.rel (0) target = $region5
    $region4: #{tpu_custom_call.1} parent=1 // pred_region
      %s15 = ssub.s32 256, 256
      %16 = vsyncadd [#allocation5], %s15
      %s17 = sshll.u32 [#allocation4], 4
      %s18 = int_to_ptr.vmem [resolvable:$true] %s17
      %23 = dma.hbm_to_vmem [thread:$0]  %s0, 256, %s18, [#allocation5], 128, 128, 8
    $region5: #{tpu_custom_call.1} parent=1 // pred_fallthru
      _
    // Predicated region
    $region6: #{tpu_custom_call.1} parent=1 // pred_check
      _
    $region7: #{tpu_custom_call.1} parent=1 // pred_check_branch
      %25 = sbr.rel (0) target = $region9
    $region8: #{tpu_custom_call.1} parent=1 // pred_region
      %s27 = ssub.s32 256, 256
      %28 = vsyncadd [#allocation8], %s27
      %s29 = sshll.u32 [#allocation7], 4
      %s30 = int_to_ptr.vmem [resolvable:$true] %s29
      %35 = dma.hbm_to_vmem [thread:$0]  %s1, 256, %s30, [#allocation8], 128, 128, 8
    $region9: #{tpu_custom_call.1} parent=1 // pred_fallthru
      _
    // Predicated region
    $region10: #{tpu_custom_call.1} parent=1 // pred_check
      _
    $region11: #{tpu_custom_call.1} parent=1 // pred_check_branch
      %37 = sbr.rel (0) target = $region13
    $region12: #{tpu_custom_call.1} parent=1 // pred_region
      _
    $region13: #{tpu_custom_call.1} parent=1 // pred_fallthru
      _
    // Predicated region
    $region14: #{tpu_custom_call.1} parent=1 // pred_check
      _
    $region15: #{tpu_custom_call.1} parent=1 // pred_check_branch
      %39 = sbr.rel (0) target = $region17
    $region16: #{tpu_custom_call.1} parent=1 // pred_region
      _
    $region17: #{tpu_custom_call.1} parent=1 // pred_fallthru
      _
    // Predicated region
    $region18: #{tpu_custom_call.1} parent=1 // pred_check
      _
    $region19: #{tpu_custom_call.1} parent=1 // pred_check_branch
      %41 = sbr.rel (0) target = $region21
    $region20: #{tpu_custom_call.1} parent=1 // pred_region
      %42 = dma.done [#allocation5], 256
    $region21: #{tpu_custom_call.1} parent=1 // pred_fallthru
      _
    // Predicated region
    $region22: #{tpu_custom_call.1} parent=1 // pred_check
      _
    $region23: #{tpu_custom_call.1} parent=1 // pred_check_branch
      %44 = sbr.rel (0) target = $region25
    $region24: #{tpu_custom_call.1} parent=1 // pred_region
      %45 = dma.done [#allocation8], 256
    $region25: #{tpu_custom_call.1} parent=1 // pred_fallthru
      _
    %p46 = scmp.eq.s32.totalorder 0, 0
    // Predicated region
    $region26: #{tpu_custom_call.1} parent=1 // pred_check
      %p47 = pneg %p46
    $region27: #{tpu_custom_call.1} parent=1 // pred_check_branch
      %49 = sbr.rel (%p47) target = $region29
    $region28: #{tpu_custom_call.1} parent=1 // pred_region
      %50 = vst [vmem:[#allocation2] sm:$0xff] 0.0
      %51 = vst [vmem:[#allocation2 + $0x8] sm:$0xff] 0.0
      %v52 = vld [vmem:[%s2] sm:$0x3]
      %v53 = vld [vmem:[%s3] sm:$0x3]
      %v54 = vadd.f32 %v53, 1.0
      %v55 = vmul.f32 %v52, %v52
      %v56 = vsub.f32 %v54, %v55
      %v57 = vmul.f32 %v53, 1.442695
      %v58 = vpow.pop %v57
      %v59 = vsub.f32 %v56, %v58
      %vm60 = vcmask 254976
      %v61 = vsel %vm60, %v59, 0.0
      %62 = vadd.xlane.f32.xlu0 %v61
      %v63 = vpop.xlane.xlu0 %62
      %v64 = vrot.slane %v63, 4
      %v65 = vadd.f32 %v63, %v64
      %v66 = vrot.slane %v65, 2
      %v67 = vadd.f32 %v65, %v66
      %v68 = vrot.slane %v67, 1
      %v69 = vadd.f32 %v67, %v68
      %s70 = vtos %v69
      %s71 = smul.f32 %s70, -0.5
      %s72 = scalar_lea.smem [#allocation3], 0
      %73 = sst [smem:[%s72]] %s71
    $region29: #{tpu_custom_call.1} parent=1 // pred_fallthru
      _
    %v74 = vld [vmem:[#allocation4] sm:$0xff]
    %v75 = vld [vmem:[#allocation4 + $0x8] sm:$0xff]
    %v76 = vld [vmem:[#allocation7] sm:$0xff]
    %v77 = vld [vmem:[#allocation7 + $0x8] sm:$0xff]
    %v78 = vsub.f32 %v74, %v76
    %v79 = vsub.f32 %v75, %v77
    %v80 = vld [vmem:[#allocation2] sm:$0xff]
    %v81 = vld [vmem:[#allocation2 + $0x8] sm:$0xff]
    %v82 = vmul.f32 %v78, %v78
    %v83 = vmul.f32 %v79, %v79
    %v84 = vadd.f32 %v80, %v82
    %v85 = vadd.f32 %v81, %v83
    %86 = vst [vmem:[#allocation2] sm:$0xff] %v84
    %87 = vst [vmem:[#allocation2 + $0x8] sm:$0xff] %v85
    // Predicated region
    $region30: #{tpu_custom_call.1} parent=1 // pred_check
      %p88 = pneg %p46
    $region31: #{tpu_custom_call.1} parent=1 // pred_check_branch
      %90 = sbr.rel (%p88) target = $region33
    $region32: #{tpu_custom_call.1} parent=1 // pred_region
      %s91 = sld [smem:[#allocation3]]
      %v92 = vld [vmem:[#allocation2] sm:$0xff]
      %v93 = vld [vmem:[#allocation2 + $0x8] sm:$0xff]
      %v94 = vadd.f32 %v92, %v93
      %95 = vadd.xlane.f32.xlu0 %v94
      %v96 = vpop.xlane.xlu0 %95
      %v97 = vrot.slane %v96, 4
      %v98 = vadd.f32 %v96, %v97
      %v99 = vrot.slane %v98, 2
      %v100 = vadd.f32 %v98, %v99
      %v101 = vrot.slane %v100, 1
      %v102 = vadd.f32 %v100, %v101
      %s103 = vtos %v102
      %s104 = sadd.f32 %s91, %s103
      %s105 = scalar_lea.smem [#allocation9], 0
      %106 = sst [smem:[%s105]] %s104
    $region33: #{tpu_custom_call.1} parent=1 // pred_fallthru
      _
    // Predicated region
    $region34: #{tpu_custom_call.1} parent=1 // pred_check
      _
    $region35: #{tpu_custom_call.1} parent=1 // pred_check_branch
      %108 = sbr.rel (0) target = $region37
    $region36: #{tpu_custom_call.1} parent=1 // pred_region
      %s110 = ssub.s32 16, 16
      %111 = vsyncadd [#allocation6], %s110
      %114 = dma.smem_to_hbm [#allocation9], 16, %s4, [#allocation6]
    $region37: #{tpu_custom_call.1} parent=1 // pred_fallthru
      _
    // Predicated region
    $region38: #{tpu_custom_call.1} parent=1 // pred_check
      _
    $region39: #{tpu_custom_call.1} parent=1 // pred_check_branch
      %116 = sbr.rel (0) target = $region41
    $region40: #{tpu_custom_call.1} parent=1 // pred_region
      %117 = dma.done [#allocation6], 16
    $region41: #{tpu_custom_call.1} parent=1 // pred_fallthru
      _
    %118 = sfence
    %119 = vsyncpa [#allocation5], 1
    %120 = vsyncpa [#allocation8], 1
    %121 = vsyncpa [#allocation6], 1

</llo_original>
